<compile_context>
chip_gen: v5e
topology: v5e:2x2
jax: 0.10.0
libtpu: 0.0.40
codegen_flags: <defaults>
</compile_context>

<pallas_src>
import jax
import jax.numpy as jnp
from jax.experimental import pallas as pl
from jax.experimental.pallas import tpu as pltpu


_LANE = 128
_SUBLANE = 8
_NEG_BIG = -1e30  # exp(-1e30) underflows to 0 in f32 -> padded rows are inert.


def _round_up(x: int, m: int) -> int:
    return ((x + m - 1) // m) * m


def _round_down(x: int, m: int) -> int:
    return (x // m) * m


def _per_element_vmem_bytes(itemsize: int) -> int:
    # Double-buffered input + double-buffered output at the I/O dtype, plus the
    # f32 exp_x temporary, plus an f32 upcast copy of x for sub-f32 inputs.
    return 4 * itemsize + 4 + (4 if itemsize < 4 else 0)


def _vmem_budget_bytes() -> int:
    # ~65% of physical per-core VMEM, capped at 96 MiB.
    # v5e/v6e (128 MiB) -> ~83 MiB, v7x (64 MiB per TC) -> ~41 MiB.
    try:
        cap = int(pltpu.get_tpu_info().vmem_capacity_bytes)
    except Exception:
        cap = 64 * 1024 * 1024  # conservative (v7x per-TC) when query fails
    return min(int(cap * 0.65), 96 * 1024 * 1024)


# ---------------------------------------------------------------------------
# Kernels
# ---------------------------------------------------------------------------

def _softmax_dim0_kernel(x_ref, o_ref):
    """Single-pass: the whole reduction axis (N) lives in one (N, td) block."""
    exp_x = jnp.exp(x_ref[...].astype(jnp.float32))          # EUP
    sum_exp_x = jnp.sum(exp_x, axis=0, keepdims=True)        # XLU column reduce
    o_ref[...] = (exp_x / sum_exp_x).astype(o_ref.dtype)     # exact divide


def _colsum_kernel(x_ref, s_ref):
    """Pass 1 of the large-N fallback: accumulate sum(exp(x)) over row tiles."""
    @pl.when(pl.program_id(1) == 0)
    def _():
        s_ref[...] = jnp.zeros_like(s_ref)
    s_ref[...] += jnp.sum(jnp.exp(x_ref[...].astype(jnp.float32)),
                          axis=0, keepdims=True)


def _normalize_kernel(x_ref, s_ref, o_ref):
    """Pass 2 of the large-N fallback: recompute exp and normalize."""
    exp_x = jnp.exp(x_ref[...].astype(jnp.float32))
    o_ref[...] = (exp_x / s_ref[...]).astype(o_ref.dtype)


# ---------------------------------------------------------------------------
# pallas_call drivers
# ---------------------------------------------------------------------------

def _single_pass(xp, N, Dp, td, vmem_limit, itemsize):
    return pl.pallas_call(
        _softmax_dim0_kernel,
        out_shape=jax.ShapeDtypeStruct((N, Dp), xp.dtype),
        grid=(Dp // td,),
        in_specs=[pl.BlockSpec((N, td), lambda j: (0, j))],
        out_specs=pl.BlockSpec((N, td), lambda j: (0, j)),
        compiler_params=pltpu.CompilerParams(
            dimension_semantics=("parallel",),
            vmem_limit_bytes=vmem_limit),
        cost_estimate=pl.CostEstimate(
            flops=2 * N * Dp,
            transcendentals=N * Dp,
            bytes_accessed=2 * N * Dp * itemsize),
    )(xp)


def _two_pass(xp, Np, Dp, tn, td, vmem_limit, itemsize):
    # Pass 1: per-column sum of exp, accumulated over row tiles.
    sums = pl.pallas_call(
        _colsum_kernel,
        out_shape=jax.ShapeDtypeStruct((1, Dp), jnp.float32),
        grid=(Dp // td, Np // tn),
        in_specs=[pl.BlockSpec((tn, td), lambda j, k: (k, j))],
        out_specs=pl.BlockSpec((1, td), lambda j, k: (0, j)),
        compiler_params=pltpu.CompilerParams(
            dimension_semantics=("parallel", "arbitrary"),
            vmem_limit_bytes=vmem_limit),
        cost_estimate=pl.CostEstimate(
            flops=Np * Dp,
            transcendentals=Np * Dp,
            bytes_accessed=Np * Dp * itemsize + Dp * 4),
    )(xp)

    # Pass 2: normalize (independent tiles).
    return pl.pallas_call(
        _normalize_kernel,
        out_shape=jax.ShapeDtypeStruct((Np, Dp), xp.dtype),
        grid=(Dp // td, Np // tn),
        in_specs=[pl.BlockSpec((tn, td), lambda j, k: (k, j)),
                  pl.BlockSpec((1, td), lambda j, k: (0, j))],
        out_specs=pl.BlockSpec((tn, td), lambda j, k: (k, j)),
        compiler_params=pltpu.CompilerParams(
            dimension_semantics=("parallel", "parallel"),
            vmem_limit_bytes=vmem_limit),
        cost_estimate=pl.CostEstimate(
            flops=Np * Dp,
            transcendentals=Np * Dp,
            bytes_accessed=2 * Np * Dp * itemsize + Dp * 4),
    )(xp, sums)


# ---------------------------------------------------------------------------
# Public wrapper (matches the PyTorch module's forward)
# ---------------------------------------------------------------------------

def softmax_dim0(x: jax.Array, *, max_lane_tile: int = 2048,
                 vmem_budget_bytes: int | None = None) -> jax.Array:
    """Pallas equivalent of the PyTorch Softmax module forward (dim=0)."""
    orig_shape = x.shape
    if x.ndim == 1:
        x2 = x.reshape(-1, 1)
    elif x.ndim == 2:
        x2 = x
    else:
        x2 = x.reshape(x.shape[0], -1)   # softmax over dim 0 is per trailing pos

    N, D = x2.shape
    itemsize = jnp.dtype(x2.dtype).itemsize
    budget = (vmem_budget_bytes if vmem_budget_bytes is not None
              else _vmem_budget_bytes())
    vmem_limit = min(budget + 8 * 1024 * 1024, 120 * 1024 * 1024)

    per_elem = _per_element_vmem_bytes(itemsize)
    Dp0 = _round_up(D, _LANE)
    # Widest lane tile whose full-N column block (+ f32 temps) fits the budget.
    td_fit = _round_down(budget // (N * per_elem), _LANE)

    if td_fit >= min(512, Dp0):
        # --- single-pass path: full reduction axis resident per block ------
        td = min(max_lane_tile, Dp0, td_fit)
        # Give v7x's 2 TensorCores at least 2 column tiles when tiles stay
        # >= 512 lanes wide (neutral on single-TC v5e/v6e).
        half = _round_down(Dp0 // 2, _LANE)
        if half >= 512:
            td = min(td, half)
        td = max(_LANE, _round_down(td, _LANE))
        Dp = _round_up(D, td)
        xp = jnp.pad(x2, ((0, 0), (0, Dp - D))) if Dp != D else x2
        out = _single_pass(xp, N, Dp, td, vmem_limit, itemsize)
        out = out[:, :D] if Dp != D else out
    else:
        # --- large-N fallback: 2-D grid with a (1, td) f32 sum accumulator -
        td = max(_LANE, min(1024, Dp0,
                            _round_down(budget // (_SUBLANE * per_elem), _LANE)))
        Dp = _round_up(D, td)
        tn = max(_SUBLANE, min(512, _round_up(N, _SUBLANE),
                               _round_down(budget // (td * per_elem), _SUBLANE)))
        Np = _round_up(N, tn)
        xp = jnp.pad(x2, ((0, 0), (0, Dp - D))) if Dp != D else x2
        if Np != N:
            # exp(-1e30) == 0 in f32 -> padded rows do not perturb column sums.
            xp = jnp.pad(xp, ((0, Np - N), (0, 0)), constant_values=_NEG_BIG)
        out = _two_pass(xp, Np, Dp, tn, td, vmem_limit, itemsize)
        out = out[:N, :D]

    return out.reshape(orig_shape)


def _reference(x):
    exp_x = jnp.exp(x.astype(jnp.float32))
    return (exp_x / jnp.sum(exp_x, axis=0, keepdims=True)).astype(x.dtype)


if __name__ == "__main__":
    key = jax.random.PRNGKey(0)
    k1, k2, k3 = jax.random.split(key, 3)

    # Case 1: D multiple of 128; force a small tile so the grid iterates
    # (exercises the multi-tile, pipelined single-pass path).
    x1 = jax.random.normal(k1, (8, 256), dtype=jnp.float32)
    out1 = jax.block_until_ready(softmax_dim0(x1, max_lane_tile=128))
    ref1 = _reference(x1)
    assert out1.shape == x1.shape and out1.dtype == x1.dtype
    assert jnp.allclose(out1, ref1, atol=1e-5, rtol=1e-5)
    assert jnp.allclose(jnp.sum(out1, axis=0), jnp.ones((256,)), atol=1e-4)

    # Case 2: D not a multiple of 128 -> lane-padded single-pass path.
    x2 = jax.random.normal(k2, (8, 32), dtype=jnp.float32)
    out2 = jax.block_until_ready(softmax_dim0(x2))
    ref2 = _reference(x2)
    assert out2.shape == x2.shape and out2.dtype == x2.dtype
    assert jnp.allclose(out2, ref2, atol=1e-5, rtol=1e-5)
    assert jnp.allclose(jnp.sum(out2, axis=0), jnp.ones((32,)), atol=1e-4)

    # Case 3: force a tiny VMEM budget to exercise the large-N two-pass
    # (accumulator) fallback path.
    x3 = jax.random.normal(k3, (64, 512), dtype=jnp.float32)
    out3 = jax.block_until_ready(softmax_dim0(x3, vmem_budget_bytes=200_000))
    ref3 = _reference(x3)
    assert out3.shape == x3.shape and out3.dtype == x3.dtype
    assert jnp.allclose(out3, ref3, atol=2e-5, rtol=2e-5)
    assert jnp.allclose(jnp.sum(out3, axis=0), jnp.ones((512,)), atol=1e-4)

    print("KERNEL_OK")
</pallas_src>

<mosaic_0001>
module attributes {stable_mosaic.version = 11 : i64} {
  func.func @_softmax_dim0_kernel(%arg0: i32, %arg1: memref<8x128xf32, #tpu.memory_space<vmem>>, %arg2: memref<8x128xf32, #tpu.memory_space<vmem>>) attributes {dimension_semantics = [#tpu.dimension_semantics<parallel>], iteration_bounds = array<i64: 2>, scalar_prefetch = 0 : i64, scratch_operands = 0 : i64, tpu.core_type = #tpu.core_type<tc>, window_params = [{transform_indices = @transform_0, window_bounds = array<i64: 8, 128>}, {transform_indices = @transform_1, window_bounds = array<i64: 8, 128>}]} {
    %c0 = arith.constant 0 : index
    %c0_0 = arith.constant 0 : index
    %0 = vector.load %arg1[%c0, %c0_0] : memref<8x128xf32, #tpu.memory_space<vmem>>, vector<8x128xf32>
    %1 = math.exp %0 : vector<8x128xf32>
    %cst = arith.constant dense<0.000000e+00> : vector<128xf32>
    %2 = vector.multi_reduction <add>, %1, %cst [0] : vector<8x128xf32> to vector<128xf32>
    %3 = vector.shape_cast %2 : vector<128xf32> to vector<1x128xf32>
    %4 = vector.broadcast %3 : vector<1x128xf32> to vector<8x128xf32>
    %5 = arith.divf %1, %4 : vector<8x128xf32>
    %c0_1 = arith.constant 0 : index
    %c0_2 = arith.constant 0 : index
    %6 = vector.load %arg2[%c0_1, %c0_2] : memref<8x128xf32, #tpu.memory_space<vmem>>, vector<8x128xf32>
    tpu.vector_store %arg2[%c0_1, %c0_2], %5 {strides = array<i32>} : memref<8x128xf32, #tpu.memory_space<vmem>>, vector<8x128xf32>,
    return
  }
  func.func @transform_0(%arg0: i32) -> (i32, i32) {
    %c0_i32 = arith.constant 0 : i32
    %c0_i32_0 = arith.constant 0 : i32
    return %c0_i32, %arg0 : i32, i32
  }
  func.func @transform_1(%arg0: i32) -> (i32, i32) {
    %c0_i32 = arith.constant 0 : i32
    %c0_i32_0 = arith.constant 0 : i32
    return %c0_i32, %arg0 : i32, i32
  }
}

</mosaic_0001>

<llo_original>
// kernel: tpu_custom_call.1
$region0: #{tpu_custom_call.1}
  #allocation0 [shape = 'u32[]', space=smem, size = 0x4, offset = 0x4, fixed_abs, tag = 'smem constant byte address 0x4 - core index']
  #allocation1 [shape = 'u32[72,128]{1,0:T(1,128)}', space=vmem, size = 0x9000, scoped, tag = 'internal scratch']
  %s0 = inlined_call_operand.hbm [shape: f32[8,256], index: 0, kind: input, shape index: {}]
  %s1 = inlined_call_operand.hbm [shape: f32[8,256], index: 1, kind: output, shape index: {}]
  %s2 = sld [smem:[#allocation0]]
  $region41: #{tpu_custom_call.1} parent=0
    _
  %s4 = ssub.s32 1, %s2
  %s5 = scalar_select 0, %s4, %s2
  $region1: #{tpu_custom_call.1} parent=0
    #allocation2 [shape = 'u8[8192]{0}', space=vmem, size = 0x2000, scoped, tag = 'input window, operand 0']
    #allocation3 [shape = 's32[2]{0}', space=sflag, size = 0x8, scoped, tag = 'scoped memory for tpu_custom_call.1']
    #allocation4 [shape = 's32[2]{0}', space=sflag, size = 0x8, scoped, tag = 'scoped memory for tpu_custom_call.1']
    #allocation5 [shape = 'u8[8192]{0}', space=vmem, size = 0x2000, scoped, tag = 'output window, operand 0']
    %6 = vsyncpa [#allocation3], 0
    %s7 = scalar_lea.sflag [#allocation3], 1
    %8 = vsyncpa %s7, 0
    %9 = vsyncpa [#allocation4], 0
    %s10 = scalar_lea.sflag [#allocation4], 1
    %11 = vsyncpa %s10, 0
    loop: start=0, step=1, limit=4
    $region2: #{tpu_custom_call.1} parent=1 // loop_pre_header
      _
    $region3: #{tpu_custom_call.1} parent=1 // loop_header
      %s13 = sphi 0, %s17
      %p14 = scmp.ge.s32.totalorder %s13, 4
      %s23 = sphi 0, %s25
      %s26 = sphi 0, %s23
      %s27 = sphi 0, %s26
      %s43 = sphi 0, %s27
      %s49 = sphi 0, %s51
      %s52 = sphi 0, %s49
      %s53 = sphi 0, %s52
      %s69 = sphi 0, %s53
    $region4: #{tpu_custom_call.1} parent=1 // loop_header_branch
      %16 = sbr.rel (%p14) target = $region8
    $region5: #{tpu_custom_call.1} parent=1 // loop_body
      %s18 = ssub.s32 %s13, 1
      %s19 = ssub.s32 %s13, 2
      %s20 = sadd.s32 %s13, 1
      %s21 = ssub.s32 %s13, %s20
      %p22 = scmp.eq.s32.totalorder %s21, 0
      %s24 = sadd.s32 %s23, 1
      %s25 = scalar_select %p22, %s23, %s24
      %p28 = pneg %p22
      %p29 = scmp.eq.s32.totalorder %s13, 1
      %p30 = por %p28, %p29
      %p31 = scmp.ne.s32.totalorder %s23, %s26
      %p32 = scmp.eq.s32.totalorder %s13, 0
      %p33 = por %p31, %p32
      %p34 = scmp.ne.s32.totalorder %s23, %s26
      %p35 = scmp.eq.s32.totalorder %s18, 1
      %p36 = por %p34, %p35
      %p37 = scmp.ne.s32.totalorder %s26, %s27
      %p38 = scmp.eq.s32.totalorder %s18, 0
      %p39 = por %p37, %p38
      %p40 = scmp.ne.s32.totalorder %s26, %s27
      %p41 = scmp.eq.s32.totalorder %s19, 1
      %p42 = por %p40, %p41
      %p44 = scmp.ne.s32.totalorder %s27, %s43
      %p45 = scmp.eq.s32.totalorder %s19, 0
      %p46 = por %p44, %p45
      %s47 = ssub.s32 %s13, %s20
      %p48 = scmp.eq.s32.totalorder %s47, 0
      %s50 = sadd.s32 %s49, 1
      %s51 = scalar_select %p48, %s49, %s50
      %p54 = pneg %p48
      %p55 = scmp.eq.s32.totalorder %s13, 1
      %p56 = por %p54, %p55
      %p57 = scmp.ne.s32.totalorder %s49, %s52
      %p58 = scmp.eq.s32.totalorder %s13, 0
      %p59 = por %p57, %p58
      %p60 = scmp.ne.s32.totalorder %s49, %s52
      %p61 = scmp.eq.s32.totalorder %s18, 1
      %p62 = por %p60, %p61
      %p63 = scmp.ne.s32.totalorder %s52, %s53
      %p64 = scmp.eq.s32.totalorder %s18, 0
      %p65 = por %p63, %p64
      %p66 = scmp.ne.s32.totalorder %s52, %s53
      %p67 = scmp.eq.s32.totalorder %s19, 1
      %p68 = por %p66, %p67
      %p70 = scmp.ne.s32.totalorder %s53, %s69
      %p71 = scmp.eq.s32.totalorder %s19, 0
      %p72 = por %p70, %p71
      %p73 = scmp.le.s32.totalorder 1, %s13
      %p74 = scmp.lt.s32.totalorder %s13, 3
      %p75 = pnand %p73, %p74
      %p76 = pneg %p75
      // Predicated region
      $region9: #{tpu_custom_call.1} parent=5 // pred_check
        _
      $region10: #{tpu_custom_call.1} parent=5 // pred_check_branch
        %78 = sbr.rel (%p75) target = $region12
      $region11: #{tpu_custom_call.1} parent=5 // pred_region
        %s79 = ssub.s32 %s13, 1
      $region12: #{tpu_custom_call.1} parent=5 // pred_fallthru
        _
      %p80 = scmp.lt.s32.totalorder %s13, 2
      // Predicated region
      $region13: #{tpu_custom_call.1} parent=5 // pred_check
        %p81 = pneg %p80
      $region14: #{tpu_custom_call.1} parent=5 // pred_check_branch
        %83 = sbr.rel (%p81) target = $region16
      $region15: #{tpu_custom_call.1} parent=5 // pred_region
        // Predicated region
        $region17: #{tpu_custom_call.1} parent=15 // pred_check
          %p84 = pneg %p33
        $region18: #{tpu_custom_call.1} parent=15 // pred_check_branch
          %86 = sbr.rel (%p84) target = $region20
        $region19: #{tpu_custom_call.1} parent=15 // pred_region
          %s87 = sand.u32 %s23, 1
          %s88 = scalar_lea.sflag [#allocation3], %s87
          %s89 = sand.u32 %s23, 1
          %s90 = smul.addr %s89, 8
          %s91 = scalar_lea.vmem [#allocation2], %s90
          %93 = vsyncadd %s88, 0
          %s94 = smul.addr %s13, 8
          %s95 = scalar_lea.hbm %s0, %s94
          %s97 = sshll.u32 %s95, 4
          %s98 = int_to_ptr.hbm [resolvable:$true] %s97
          %s99 = sshll.u32 %s91, 4
          %s100 = int_to_ptr.vmem [resolvable:$true] %s99
          %102 = dma.hbm_to_vmem [thread:$0]  %s98, 128, %s100, %s88
        $region20: #{tpu_custom_call.1} parent=15 // pred_fallthru
          _
      $region16: #{tpu_custom_call.1} parent=5 // pred_fallthru
        _
      %p103 = scmp.le.s32.totalorder 1, %s13
      %p104 = scmp.lt.s32.totalorder %s13, 3
      %p105 = pnand %p103, %p104
      %p106 = pneg %p105
      // Predicated region
      $region21: #{tpu_custom_call.1} parent=5 // pred_check
        _
      $region22: #{tpu_custom_call.1} parent=5 // pred_check_branch
        %108 = sbr.rel (%p105) target = $region24
      $region23: #{tpu_custom_call.1} parent=5 // pred_region
        %s109 = ssub.s32 %s13, 1
        %s110 = sand.u32 %s26, 1
        %s111 = scalar_lea.sflag [#allocation3], %s110
        %s112 = sand.u32 %s26, 1
        %s113 = smul.addr %s112, 8
        %s114 = scalar_lea.vmem [#allocation2], %s113
        // Predicated region
        $region25: #{tpu_custom_call.1} parent=23 // pred_check
          %p115 = pneg %p39
        $region26: #{tpu_custom_call.1} parent=23 // pred_check_branch
          %117 = sbr.rel (%p115) target = $region28
        $region27: #{tpu_custom_call.1} parent=23 // pred_region
          %119 = dma.done %s111, 128
        $region28: #{tpu_custom_call.1} parent=23 // pred_fallthru
          _
        %s120 = sand.u32 %s26, 1
        %s121 = scalar_lea.sflag [#allocation3], %s120
        %s122 = sand.u32 %s26, 1
        %s123 = smul.addr %s122, 8
        %s124 = scalar_lea.vmem [#allocation2], %s123
        %p125 = pneg %p39
        %p126 = pneg %p36
        %p127 = pneg %p65
        %p128 = pneg %p62
        %s129 = sand.u32 %s52, 1
        %s130 = scalar_lea.sflag [#allocation4], %s129
        %s131 = sand.u32 %s52, 1
        %s132 = smul.addr %s131, 8
        %s133 = scalar_lea.vmem [#allocation5], %s132
        %v134 = vld [vmem:[%s114] sm:$0xff]
        %v135 = vmul.f32 %v134, 1.442695
        %v136 = vpow.pop %v135
        %v137 = vrot.slane %v136, 4
        %v138 = vadd.f32 %v136, %v137
        %v139 = vrot.slane %v138, 2
        %v140 = vadd.f32 %v138, %v139
        %v141 = vrot.slane %v140, 1
        %v142 = vadd.f32 %v140, %v141
        %v143 = vrcp.pop %v142
        %v144 = vmul.f32 %v142, %v143
        %v145 = vsub.f32 1.0, %v144
        %v146 = vmul.f32 %v143, %v145
        %v147 = vadd.f32 %v143, %v146
        %vm148 = vweird.f32 %v142
        %vm149 = vweird.f32 %v143
        %vm150 = vmor %vm148, %vm149
        %v151 = vsel %vm150, %v143, %v147
        %v152 = vand.u32 2147483647, %v142
        %vm153 = vcmp.eq.f32.partialorder %v152, 8.507059e+37
        %v154 = vand.u32 %v142, 2147483648
        %v155 = vor.u32 1.1754944e-38, %v154
        %v156 = vsel %vm153, %v155, %v151
        %v157 = vmul.f32 %v136, %v156
        %158 = vst [vmem:[%s133] sm:$0xff] %v157
        %s159 = sand.u32 %s52, 1
        %s160 = scalar_lea.sflag [#allocation4], %s159
        %s161 = sand.u32 %s52, 1
        %s162 = smul.addr %s161, 8
        %s163 = scalar_lea.vmem [#allocation5], %s162
        // Predicated region
        $region29: #{tpu_custom_call.1} parent=23 // pred_check
          %p164 = pneg %p62
        $region30: #{tpu_custom_call.1} parent=23 // pred_check_branch
          %166 = sbr.rel (%p164) target = $region32
        $region31: #{tpu_custom_call.1} parent=23 // pred_region
          %168 = vsyncadd %s160, 0
          %s169 = smul.addr %s18, 8
          %s170 = scalar_lea.hbm %s1, %s169
          %s172 = sshll.u32 %s163, 4
          %s173 = int_to_ptr.vmem [resolvable:$true] %s172
          %s174 = sshll.u32 %s170, 4
          %s175 = int_to_ptr.hbm [resolvable:$true] %s174
          %177 = dma.vmem_to_hbm [thread:$0]  %s173, 128, %s175, %s160
        $region32: #{tpu_custom_call.1} parent=23 // pred_fallthru
          _
      $region24: #{tpu_custom_call.1} parent=5 // pred_fallthru
        _
      %p178 = scmp.le.s32.totalorder 2, %s13
      // Predicated region
      $region33: #{tpu_custom_call.1} parent=5 // pred_check
        %p179 = pneg %p178
      $region34: #{tpu_custom_call.1} parent=5 // pred_check_branch
        %181 = sbr.rel (%p179) target = $region36
      $region35: #{tpu_custom_call.1} parent=5 // pred_region
        %s182 = ssub.s32 %s13, 2
        // Predicated region
        $region37: #{tpu_custom_call.1} parent=35 // pred_check
          %p183 = pneg %p68
        $region38: #{tpu_custom_call.1} parent=35 // pred_check_branch
          %185 = sbr.rel (%p183) target = $region40
        $region39: #{tpu_custom_call.1} parent=35 // pred_region
          %s186 = sand.u32 %s53, 1
          %s187 = scalar_lea.sflag [#allocation4], %s186
          %s188 = sand.u32 %s53, 1
          %s189 = smul.addr %s188, 8
          %s190 = scalar_lea.vmem [#allocation5], %s189
          %192 = dma.done %s187, 128
        $region40: #{tpu_custom_call.1} parent=35 // pred_fallthru
          _
      $region36: #{tpu_custom_call.1} parent=5 // pred_fallthru
        _
    $region6: #{tpu_custom_call.1} parent=1 // loop_footer
      %s17 = sadd.s32 1, %s13
    $region7: #{tpu_custom_call.1} parent=1 // loop_footer_branch
      %12 = sbr.rel target = $region3
    $region8: #{tpu_custom_call.1} parent=1 // loop_exit
      _
    %193 = vsyncpa [#allocation3], 1
    %s194 = scalar_lea.sflag [#allocation3], 1
    %195 = vsyncpa %s194, 1
    %196 = vsyncpa [#allocation4], 1
    %s197 = scalar_lea.sflag [#allocation4], 1
    %198 = vsyncpa %s197, 1

</llo_original>
